<compile_context>
chip_gen: v5e
topology: v5e:2x2
jax: 0.10.0
libtpu: 0.0.40
codegen_flags: <defaults>
</compile_context>

<pallas_src>
import functools

import jax
import jax.numpy as jnp
import numpy as np
from jax.experimental import pallas as pl
from jax.experimental.pallas import tpu as pltpu


def _round_up(x, m):
    return ((x + m - 1) // m) * m


# -----------------------------------------------------------------------------
# Fused kernel: (folded preprocess) 1x1 conv + ReLU + global-average-pool + BN
# -----------------------------------------------------------------------------
def _fused_backbone_heads_kernel(
    x_ref,      # (1, Cin, THW)   image block; channels on sublanes, pixels on lanes
    w_ref,      # (Cout, Cin)     1x1-conv weight, preprocess folded in, transposed
    b_ref,      # (Cout, 1)       folded bias
    g_ref,      # (Cout, 1)       BN gamma
    be_ref,     # (Cout, 1)       BN beta
    rm_ref,     # (Cout, 1)       BN running mean
    rv_ref,     # (Cout, 1)       BN running var
    o_ref,      # (1, Cout, 1)    pooled + BN output for this image
    acc_ref,    # (Cout, 1) f32   GAP partial-sum accumulator (scratch)
    *,
    hw_total,   # true H*W (pre-padding): used for tail masking AND the 1/HW normalization
    tile_hw,
    mask_tail,
):
    t = pl.program_id(1)

    @pl.when(t == 0)
    def _init():
        acc_ref[...] = jnp.zeros_like(acc_ref)

    x = x_ref[0]                  # (Cin, THW)
    w = w_ref[...]                # (Cout, Cin)
    cin = x.shape[0]

    if cin <= 8:
        # K is tiny: unrolled VPU multiply-adds, skip the MXU entirely.
        y = b_ref[...] + w[:, 0:1] * x[0:1, :]
        for c in range(1, cin):
            y = y + w[:, c:c + 1] * x[c:c + 1, :]
    else:
        y = jnp.dot(w, x, preferred_element_type=jnp.float32) + b_ref[...]

    y = jnp.maximum(y, 0.0)       # ReLU

    if mask_tail:
        # Zero out padded pixel columns so they do not contribute to the pool sum
        # (padded input is 0 but relu(bias) may be nonzero).
        col = jax.lax.broadcasted_iota(jnp.int32, y.shape, 1) + t * tile_hw
        y = jnp.where(col < hw_total, y, 0.0)

    # Partial global-average-pool sum (lane reduction -> XLU slot, free vs. the load-bound path).
    acc_ref[...] += jnp.sum(y, axis=1, keepdims=True)

    @pl.when(t == pl.num_programs(1) - 1)
    def _finalize():
        pooled = acc_ref[...] * (1.0 / hw_total)          # normalize by the FULL H*W
        inv = jax.lax.rsqrt(rv_ref[...] + 1e-5)           # BN eval, eps = 1e-5
        out = (pooled - rm_ref[...]) * inv * g_ref[...] + be_ref[...]
        o_ref[...] = out[None]                            # (1, Cout, 1)


# -----------------------------------------------------------------------------
# Wrapper: MALW_Baseline.forward (inference path)
# -----------------------------------------------------------------------------
def malw_baseline_forward(images_nchw, params, *, max_tile_hw=2048):
    """MALW_Baseline.forward, eval path. Returns (N, C_feat) neck features."""
    N, Cin, H, W = images_nchw.shape
    Cout = params["conv_w"].shape[1]
    HW = H * W

    # ---- one-time constant fold of the preprocess into the 1x1 conv ------------
    # (x - m)/s @ W + b  ==  x @ (W * (1/s)[:,None])  +  (b - (m/s) @ W)
    inv_std = 1.0 / params["pixel_std"]                                  # (Cin,)
    w_folded = params["conv_w"] * inv_std[:, None]                       # (Cin, Cout)
    b_folded = params["conv_b"] - (params["pixel_mean"] * inv_std) @ params["conv_w"]
    w_t = jnp.asarray(w_folded.T, jnp.float32)                           # (Cout, Cin)
    b_col = jnp.asarray(b_folded, jnp.float32)[:, None]                  # (Cout, 1)
    g_col = jnp.asarray(params["bn_gamma"], jnp.float32)[:, None]
    be_col = jnp.asarray(params["bn_beta"], jnp.float32)[:, None]
    rm_col = jnp.asarray(params["bn_mean"], jnp.float32)[:, None]
    rv_col = jnp.asarray(params["bn_var"], jnp.float32)[:, None]

    # ---- layout: NCHW already has channels-on-sublanes / pixels-on-lanes --------
    x = images_nchw.astype(jnp.float32).reshape(N, Cin, HW)              # free reshape

    tile_hw = min(max_tile_hw, _round_up(HW, 128))
    hw_pad = _round_up(HW, tile_hw)
    if hw_pad != HW:
        x = jnp.pad(x, ((0, 0), (0, 0), (0, hw_pad - HW)))
    num_hw_tiles = hw_pad // tile_hw

    kernel = functools.partial(
        _fused_backbone_heads_kernel,
        hw_total=HW, tile_hw=tile_hw, mask_tail=(hw_pad != HW),
    )

    out = pl.pallas_call(
        kernel,
        out_shape=jax.ShapeDtypeStruct((N, Cout, 1), jnp.float32),
        grid_spec=pltpu.PrefetchScalarGridSpec(
            num_scalar_prefetch=0,
            grid=(N, num_hw_tiles),                      # image axis, then HW reduction axis
            in_specs=[
                pl.BlockSpec((1, Cin, tile_hw), lambda n, t: (n, 0, t)),
                pl.BlockSpec((Cout, Cin), lambda n, t: (0, 0)),
                pl.BlockSpec((Cout, 1), lambda n, t: (0, 0)),
                pl.BlockSpec((Cout, 1), lambda n, t: (0, 0)),
                pl.BlockSpec((Cout, 1), lambda n, t: (0, 0)),
                pl.BlockSpec((Cout, 1), lambda n, t: (0, 0)),
                pl.BlockSpec((Cout, 1), lambda n, t: (0, 0)),
            ],
            out_specs=pl.BlockSpec((1, Cout, 1), lambda n, t: (n, 0, 0)),
            scratch_shapes=[pltpu.VMEM((Cout, 1), jnp.float32)],
        ),
        compiler_params=pltpu.CompilerParams(
            dimension_semantics=("parallel", "arbitrary"),
        ),
    )(x, w_t, b_col, g_col, be_col, rm_col, rv_col)

    return out[:, :, 0]   # (N, C_feat) — what heads() returns at inference


# -----------------------------------------------------------------------------
# Pure-JAX reference (original, unfused math) for a correctness sanity check
# -----------------------------------------------------------------------------
def _reference_forward(images_nchw, params):
    N, Cin, H, W = images_nchw.shape
    x = jnp.transpose(images_nchw, (0, 2, 3, 1)).reshape(N * H * W, Cin)
    xn = (x - params["pixel_mean"][None, :]) / params["pixel_std"][None, :]
    y = jnp.maximum(xn @ params["conv_w"] + params["conv_b"][None, :], 0.0)
    pooled = y.reshape(N, H * W, -1).mean(axis=1)
    inv = 1.0 / jnp.sqrt(params["bn_var"] + 1e-5)
    return (pooled - params["bn_mean"][None, :]) * inv[None, :] * params["bn_gamma"][None, :] \
        + params["bn_beta"][None, :]


if __name__ == "__main__":
    key = jax.random.PRNGKey(0)
    N, C_in, H, W = 2, 4, 16, 16
    C_feat = 32

    k_img, k_w, k_b, k_bn, k_bm, k_bv = jax.random.split(key, 6)
    params = {
        # pixel_mean / pixel_std buffers (per-channel)
        "pixel_mean": jnp.array([123.675, 116.28, 103.53, 110.0], jnp.float32),
        "pixel_std":  jnp.array([58.395, 57.12, 57.375, 57.0], jnp.float32),
        # synthetic 1x1-conv backbone weights
        "conv_w": 0.1 * jax.random.normal(k_w, (C_in, C_feat), jnp.float32),
        "conv_b": 0.01 * jax.random.normal(k_b, (C_feat,), jnp.float32),
        # EmbeddingHead bottleneck BN (eval mode: running stats)
        "bn_gamma": 1.0 + 0.05 * jax.random.normal(k_bn, (C_feat,), jnp.float32),
        "bn_beta":  0.02 * jnp.ones((C_feat,), jnp.float32),
        "bn_mean":  0.1 * jax.random.normal(k_bm, (C_feat,), jnp.float32),
        "bn_var":   1.0 + 0.1 * jax.random.uniform(k_bv, (C_feat,), jnp.float32),
    }

    # Case 1: HW divides the tile exactly (no tail).
    images = jax.random.uniform(k_img, (N, C_in, H, W), jnp.float32) * 255.0
    out = jax.block_until_ready(malw_baseline_forward(images, params))
    ref = _reference_forward(images, params)
    np.testing.assert_allclose(np.asarray(out), np.asarray(ref), rtol=1e-4, atol=1e-4)

    # Case 2: HW not a multiple of 128 -> exercises padding + masked-tail path.
    images2 = jax.random.uniform(k_img, (N, C_in, 15, 15), jnp.float32) * 255.0
    out2 = jax.block_until_ready(malw_baseline_forward(images2, params))
    ref2 = _reference_forward(images2, params)
    np.testing.assert_allclose(np.asarray(out2), np.asarray(ref2), rtol=1e-4, atol=1e-4)

    print("KERNEL_OK")
</pallas_src>

<mosaic_0001>
module attributes {stable_mosaic.version = 11 : i64} {
  func.func @_fused_backbone_heads_kernel(%arg0: i32, %arg1: i32, %arg2: memref<1x4x256xf32, #tpu.memory_space<vmem>>, %arg3: memref<32x4xf32, #tpu.memory_space<vmem>>, %arg4: memref<32x1xf32, #tpu.memory_space<vmem>>, %arg5: memref<32x1xf32, #tpu.memory_space<vmem>>, %arg6: memref<32x1xf32, #tpu.memory_space<vmem>>, %arg7: memref<32x1xf32, #tpu.memory_space<vmem>>, %arg8: memref<32x1xf32, #tpu.memory_space<vmem>>, %arg9: memref<1x32x1xf32, #tpu.memory_space<vmem>>, %arg10: memref<32x1xf32, #tpu.memory_space<vmem>>) attributes {dimension_semantics = [#tpu.dimension_semantics<parallel>, #tpu.dimension_semantics<arbitrary>], iteration_bounds = array<i64: 2, 1>, scalar_prefetch = 0 : i64, scratch_operands = 1 : i64, tpu.core_type = #tpu.core_type<tc>, window_params = [{transform_indices = @transform_0, window_bounds = array<i64: 1, 4, 256>}, {pipeline_mode = #tpu.pipeline_mode<synchronous>, transform_indices = @transform_1, window_bounds = array<i64: 32, 4>}, {pipeline_mode = #tpu.pipeline_mode<synchronous>, transform_indices = @transform_2, window_bounds = array<i64: 32, 1>}, {pipeline_mode = #tpu.pipeline_mode<synchronous>, transform_indices = @transform_3, window_bounds = array<i64: 32, 1>}, {pipeline_mode = #tpu.pipeline_mode<synchronous>, transform_indices = @transform_4, window_bounds = array<i64: 32, 1>}, {pipeline_mode = #tpu.pipeline_mode<synchronous>, transform_indices = @transform_5, window_bounds = array<i64: 32, 1>}, {pipeline_mode = #tpu.pipeline_mode<synchronous>, transform_indices = @transform_6, window_bounds = array<i64: 32, 1>}, {transform_indices = @transform_7, window_bounds = array<i64: 1, 32, 1>}]} {
    %c0_i32 = arith.constant 0 : i32
    %0 = arith.cmpi eq, %arg1, %c0_i32 : i32
    %1 = arith.extui %0 : i1 to i32
    %c0_i32_0 = arith.constant 0 : i32
    %2 = arith.cmpi ne, %1, %c0_i32_0 : i32
    scf.if %2 {
      %cst_14 = arith.constant 0.000000e+00 : f32
      %42 = vector.broadcast %cst_14 : f32 to vector<32x1xf32>
      %c0_15 = arith.constant 0 : index
      %c0_16 = arith.constant 0 : index
      %43 = vector.load %arg10[%c0_15, %c0_16] : memref<32x1xf32, #tpu.memory_space<vmem>>, vector<32x1xf32>
      tpu.vector_store %arg10[%c0_15, %c0_16], %42 {strides = array<i32>} : memref<32x1xf32, #tpu.memory_space<vmem>>, vector<32x1xf32>,
    } else {
    }
    %c0 = arith.constant 0 : index
    %c0_1 = arith.constant 0 : index
    %c0_2 = arith.constant 0 : index
    %3 = vector.load %arg2[%c0, %c0_1, %c0_2] : memref<1x4x256xf32, #tpu.memory_space<vmem>>, vector<1x4x256xf32>
    %4 = vector.shape_cast %3 : vector<1x4x256xf32> to vector<4x256xf32>
    %c0_3 = arith.constant 0 : index
    %c0_4 = arith.constant 0 : index
    %5 = vector.load %arg3[%c0_3, %c0_4] : memref<32x4xf32, #tpu.memory_space<vmem>>, vector<32x4xf32>
    %c0_5 = arith.constant 0 : index
    %c0_6 = arith.constant 0 : index
    %6 = vector.load %arg4[%c0_5, %c0_6] : memref<32x1xf32, #tpu.memory_space<vmem>>, vector<32x1xf32>
    %7 = vector.extract_strided_slice %5 {offsets = [0, 0], sizes = [32, 1], strides = [1, 1]} : vector<32x4xf32> to vector<32x1xf32>
    %8 = vector.extract_strided_slice %4 {offsets = [0, 0], sizes = [1, 256], strides = [1, 1]} : vector<4x256xf32> to vector<1x256xf32>
    %9 = vector.broadcast %7 : vector<32x1xf32> to vector<32x256xf32>
    %10 = vector.broadcast %8 : vector<1x256xf32> to vector<32x256xf32>
    %11 = arith.mulf %9, %10 : vector<32x256xf32>
    %12 = vector.broadcast %6 : vector<32x1xf32> to vector<32x256xf32>
    %13 = arith.addf %12, %11 : vector<32x256xf32>
    %14 = vector.extract_strided_slice %5 {offsets = [0, 1], sizes = [32, 1], strides = [1, 1]} : vector<32x4xf32> to vector<32x1xf32>
    %15 = vector.extract_strided_slice %4 {offsets = [1, 0], sizes = [1, 256], strides = [1, 1]} : vector<4x256xf32> to vector<1x256xf32>
    %16 = vector.broadcast %14 : vector<32x1xf32> to vector<32x256xf32>
    %17 = vector.broadcast %15 : vector<1x256xf32> to vector<32x256xf32>
    %18 = arith.mulf %16, %17 : vector<32x256xf32>
    %19 = arith.addf %13, %18 : vector<32x256xf32>
    %20 = vector.extract_strided_slice %5 {offsets = [0, 2], sizes = [32, 1], strides = [1, 1]} : vector<32x4xf32> to vector<32x1xf32>
    %21 = vector.extract_strided_slice %4 {offsets = [2, 0], sizes = [1, 256], strides = [1, 1]} : vector<4x256xf32> to vector<1x256xf32>
    %22 = vector.broadcast %20 : vector<32x1xf32> to vector<32x256xf32>
    %23 = vector.broadcast %21 : vector<1x256xf32> to vector<32x256xf32>
    %24 = arith.mulf %22, %23 : vector<32x256xf32>
    %25 = arith.addf %19, %24 : vector<32x256xf32>
    %26 = vector.extract_strided_slice %5 {offsets = [0, 3], sizes = [32, 1], strides = [1, 1]} : vector<32x4xf32> to vector<32x1xf32>
    %27 = vector.extract_strided_slice %4 {offsets = [3, 0], sizes = [1, 256], strides = [1, 1]} : vector<4x256xf32> to vector<1x256xf32>
    %28 = vector.broadcast %26 : vector<32x1xf32> to vector<32x256xf32>
    %29 = vector.broadcast %27 : vector<1x256xf32> to vector<32x256xf32>
    %30 = arith.mulf %28, %29 : vector<32x256xf32>
    %31 = arith.addf %25, %30 : vector<32x256xf32>
    %cst = arith.constant 0.000000e+00 : f32
    %32 = vector.broadcast %cst : f32 to vector<32x256xf32>
    %33 = arith.maximumf %31, %32 : vector<32x256xf32>
    %c0_7 = arith.constant 0 : index
    %c0_8 = arith.constant 0 : index
    %34 = vector.load %arg10[%c0_7, %c0_8] : memref<32x1xf32, #tpu.memory_space<vmem>>, vector<32x1xf32>
    %cst_9 = arith.constant dense<0.000000e+00> : vector<32xf32>
    %35 = vector.multi_reduction <add>, %33, %cst_9 [1] : vector<32x256xf32> to vector<32xf32>
    %36 = vector.shape_cast %35 : vector<32xf32> to vector<32x1xf32>
    %37 = arith.addf %34, %36 : vector<32x1xf32>
    %c0_10 = arith.constant 0 : index
    %c0_11 = arith.constant 0 : index
    %38 = vector.load %arg10[%c0_10, %c0_11] : memref<32x1xf32, #tpu.memory_space<vmem>>, vector<32x1xf32>
    tpu.vector_store %arg10[%c0_10, %c0_11], %37 {strides = array<i32>} : memref<32x1xf32, #tpu.memory_space<vmem>>, vector<32x1xf32>,
    %c0_i32_12 = arith.constant 0 : i32
    %39 = arith.cmpi eq, %arg1, %c0_i32_12 : i32
    %40 = arith.extui %39 : i1 to i32
    %c0_i32_13 = arith.constant 0 : i32
    %41 = arith.cmpi ne, %40, %c0_i32_13 : i32
    scf.if %41 {
      %c0_14 = arith.constant 0 : index
      %c0_15 = arith.constant 0 : index
      %42 = vector.load %arg10[%c0_14, %c0_15] : memref<32x1xf32, #tpu.memory_space<vmem>>, vector<32x1xf32>
      %cst_16 = arith.constant 3.906250e-03 : f32
      %43 = vector.broadcast %cst_16 : f32 to vector<32x1xf32>
      %44 = arith.mulf %42, %43 : vector<32x1xf32>
      %c0_17 = arith.constant 0 : index
      %c0_18 = arith.constant 0 : index
      %45 = vector.load %arg8[%c0_17, %c0_18] : memref<32x1xf32, #tpu.memory_space<vmem>>, vector<32x1xf32>
      %cst_19 = arith.constant 9.99999974E-6 : f32
      %46 = vector.broadcast %cst_19 : f32 to vector<32x1xf32>
      %47 = arith.addf %45, %46 : vector<32x1xf32>
      %48 = math.rsqrt %47 : vector<32x1xf32>
      %c0_20 = arith.constant 0 : index
      %c0_21 = arith.constant 0 : index
      %49 = vector.load %arg7[%c0_20, %c0_21] : memref<32x1xf32, #tpu.memory_space<vmem>>, vector<32x1xf32>
      %50 = arith.subf %44, %49 : vector<32x1xf32>
      %51 = arith.mulf %50, %48 : vector<32x1xf32>
      %c0_22 = arith.constant 0 : index
      %c0_23 = arith.constant 0 : index
      %52 = vector.load %arg5[%c0_22, %c0_23] : memref<32x1xf32, #tpu.memory_space<vmem>>, vector<32x1xf32>
      %53 = arith.mulf %51, %52 : vector<32x1xf32>
      %c0_24 = arith.constant 0 : index
      %c0_25 = arith.constant 0 : index
      %54 = vector.load %arg6[%c0_24, %c0_25] : memref<32x1xf32, #tpu.memory_space<vmem>>, vector<32x1xf32>
      %55 = arith.addf %53, %54 : vector<32x1xf32>
      %56 = vector.shape_cast %55 : vector<32x1xf32> to vector<1x32x1xf32>
      %c0_26 = arith.constant 0 : index
      %c0_27 = arith.constant 0 : index
      %c0_28 = arith.constant 0 : index
      %57 = vector.load %arg9[%c0_26, %c0_27, %c0_28] : memref<1x32x1xf32, #tpu.memory_space<vmem>>, vector<1x32x1xf32>
      tpu.vector_store %arg9[%c0_26, %c0_27, %c0_28], %56 {strides = array<i32>} : memref<1x32x1xf32, #tpu.memory_space<vmem>>, vector<1x32x1xf32>,
    } else {
    }
    return
  }
  func.func @transform_0(%arg0: i32, %arg1: i32) -> (i32, i32, i32) {
    %c0_i32 = arith.constant 0 : i32
    %c0_i32_0 = arith.constant 0 : i32
    return %arg0, %c0_i32, %arg1 : i32, i32, i32
  }
  func.func @transform_1(%arg0: i32, %arg1: i32) -> (i32, i32) {
    %c0_i32 = arith.constant 0 : i32
    %c0_i32_0 = arith.constant 0 : i32
    %c0_i32_1 = arith.constant 0 : i32
    return %c0_i32, %c0_i32_0 : i32, i32
  }
  func.func @transform_2(%arg0: i32, %arg1: i32) -> (i32, i32) {
    %c0_i32 = arith.constant 0 : i32
    %c0_i32_0 = arith.constant 0 : i32
    %c0_i32_1 = arith.constant 0 : i32
    return %c0_i32, %c0_i32_0 : i32, i32
  }
  func.func @transform_3(%arg0: i32, %arg1: i32) -> (i32, i32) {
    %c0_i32 = arith.constant 0 : i32
    %c0_i32_0 = arith.constant 0 : i32
    %c0_i32_1 = arith.constant 0 : i32
    return %c0_i32, %c0_i32_0 : i32, i32
  }
  func.func @transform_4(%arg0: i32, %arg1: i32) -> (i32, i32) {
    %c0_i32 = arith.constant 0 : i32
    %c0_i32_0 = arith.constant 0 : i32
    %c0_i32_1 = arith.constant 0 : i32
    return %c0_i32, %c0_i32_0 : i32, i32
  }
  func.func @transform_5(%arg0: i32, %arg1: i32) -> (i32, i32) {
    %c0_i32 = arith.constant 0 : i32
    %c0_i32_0 = arith.constant 0 : i32
    %c0_i32_1 = arith.constant 0 : i32
    return %c0_i32, %c0_i32_0 : i32, i32
  }
  func.func @transform_6(%arg0: i32, %arg1: i32) -> (i32, i32) {
    %c0_i32 = arith.constant 0 : i32
    %c0_i32_0 = arith.constant 0 : i32
    %c0_i32_1 = arith.constant 0 : i32
    return %c0_i32, %c0_i32_0 : i32, i32
  }
  func.func @transform_7(%arg0: i32, %arg1: i32) -> (i32, i32, i32) {
    %c0_i32 = arith.constant 0 : i32
    %c0_i32_0 = arith.constant 0 : i32
    %c0_i32_1 = arith.constant 0 : i32
    return %arg0, %c0_i32, %c0_i32_0 : i32, i32, i32
  }
}

</mosaic_0001>

<llo_original>
// kernel: tpu_custom_call.1
$region0: #{tpu_custom_call.1}
  #allocation0 [shape = 'u32[]', space=smem, size = 0x4, offset = 0x4, fixed_abs, tag = 'smem constant byte address 0x4 - core index']
  #allocation1 [shape = 'u32[72,128]{1,0:T(1,128)}', space=vmem, size = 0x9000, scoped, tag = 'internal scratch']
  #allocation2 [shape = 'f32[32,1]{1,0:T(8,128)}', space=vmem, size = 0x4000, scoped, tag = 'scratch operand']
  %s0 = inlined_call_operand.vmem [shape: f32[2,4,256], index: 0, kind: input, shape index: {}]
  %s1 = inlined_call_operand.vmem [shape: f32[32,4], index: 1, kind: input, shape index: {}]
  %s2 = inlined_call_operand.vmem [shape: f32[32,1], index: 2, kind: input, shape index: {}]
  %s3 = inlined_call_operand.vmem [shape: f32[32,1], index: 3, kind: input, shape index: {}]
  %s4 = inlined_call_operand.vmem [shape: f32[32,1], index: 4, kind: input, shape index: {}]
  %s5 = inlined_call_operand.vmem [shape: f32[32,1], index: 5, kind: input, shape index: {}]
  %s6 = inlined_call_operand.vmem [shape: f32[32,1], index: 6, kind: input, shape index: {}]
  %s7 = inlined_call_operand.vmem [shape: f32[2,32,1], index: 7, kind: output, shape index: {}]
  %s8 = sld [smem:[#allocation0]]
  $region69: #{tpu_custom_call.1} parent=0
    _
  %s10 = ssub.s32 1, %s8
  %s11 = scalar_select 0, %s10, %s8
  loop: start=0, step=1, limit=4
  $region2: #{tpu_custom_call.1} parent=0 // loop_pre_header
    _
  $region3: #{tpu_custom_call.1} parent=0 // loop_header
    %s13 = sphi 0, %s17
    %p14 = scmp.ge.s32.totalorder %s13, 4
    %s20 = sphi 0, %s32
    %s21 = sphi 0, %s28
    %s22 = sphi 0, %s20
    %s23 = sphi 0, %s21
    %s24 = sphi 0, %s22
    %s25 = sphi 0, %s23
    %s37 = sphi 0, %s39
    %s40 = sphi 0, %s37
    %s41 = sphi 0, %s40
    %s57 = sphi 0, %s41
    %s61 = sphi 0, %s61
    %s63 = sphi 0, %s61
    %s64 = sphi 0, %s63
    %s78 = sphi 0, %s64
    %s82 = sphi 0, %s82
    %s84 = sphi 0, %s82
    %s85 = sphi 0, %s84
    %s99 = sphi 0, %s85
    %s103 = sphi 0, %s103
    %s105 = sphi 0, %s103
    %s106 = sphi 0, %s105
    %s120 = sphi 0, %s106
    %s124 = sphi 0, %s124
    %s126 = sphi 0, %s124
    %s127 = sphi 0, %s126
    %s141 = sphi 0, %s127
    %s145 = sphi 0, %s145
    %s147 = sphi 0, %s145
    %s148 = sphi 0, %s147
    %s162 = sphi 0, %s148
    %s166 = sphi 0, %s166
    %s168 = sphi 0, %s166
    %s169 = sphi 0, %s168
    %s183 = sphi 0, %s169
    %s189 = sphi 0, %s191
    %s192 = sphi 0, %s189
    %s193 = sphi 0, %s192
    %s209 = sphi 0, %s193
  $region4: #{tpu_custom_call.1} parent=0 // loop_header_branch
    %16 = sbr.rel (%p14) target = $region8
  $region5: #{tpu_custom_call.1} parent=0 // loop_body
    %s18 = ssub.s32 %s13, 1
    %s19 = ssub.s32 %s13, 2
    %s26 = sadd.s32 1, %s21
    %p27 = scmp.ge.s32.totalorder %s26, 1
    %s28 = scalar_select %p27, 0, %s26
    %s29 = sadd.s32 1, %s20
    %s30 = scalar_select %p27, %s29, %s20
    %p31 = scmp.ge.s32.totalorder %s30, 2
    %s32 = scalar_select %p31, 0, %s30
    %s33 = ssub.s32 %s20, %s32
    %s34 = ssub.s32 %s21, %s28
    %s35 = sor.u32 %s33, %s34
    %p36 = scmp.eq.s32.totalorder %s35, 0
    %s38 = sadd.s32 %s37, 1
    %s39 = scalar_select %p36, %s37, %s38
    %p42 = pneg %p36
    %p43 = scmp.eq.s32.totalorder %s13, 1
    %p44 = por %p42, %p43
    %p45 = scmp.ne.s32.totalorder %s37, %s40
    %p46 = scmp.eq.s32.totalorder %s13, 0
    %p47 = por %p45, %p46
    %p48 = scmp.ne.s32.totalorder %s37, %s40
    %p49 = scmp.eq.s32.totalorder %s18, 1
    %p50 = por %p48, %p49
    %p51 = scmp.ne.s32.totalorder %s40, %s41
    %p52 = scmp.eq.s32.totalorder %s18, 0
    %p53 = por %p51, %p52
    %p54 = scmp.ne.s32.totalorder %s40, %s41
    %p55 = scmp.eq.s32.totalorder %s19, 1
    %p56 = por %p54, %p55
    %p58 = scmp.ne.s32.totalorder %s41, %s57
    %p59 = scmp.eq.s32.totalorder %s19, 0
    %p60 = por %p58, %p59
    %s62 = sadd.s32 %s61, 1
    %p65 = scmp.eq.s32.totalorder %s13, 1
    %p66 = scmp.ne.s32.totalorder %s61, %s63
    %p67 = scmp.eq.s32.totalorder %s13, 0
    %p68 = por %p66, %p67
    %p69 = scmp.ne.s32.totalorder %s61, %s63
    %p70 = scmp.eq.s32.totalorder %s18, 1
    %p71 = por %p69, %p70
    %p72 = scmp.ne.s32.totalorder %s63, %s64
    %p73 = scmp.eq.s32.totalorder %s18, 0
    %p74 = por %p72, %p73
    %p75 = scmp.ne.s32.totalorder %s63, %s64
    %p76 = scmp.eq.s32.totalorder %s19, 1
    %p77 = por %p75, %p76
    %p79 = scmp.ne.s32.totalorder %s64, %s78
    %p80 = scmp.eq.s32.totalorder %s19, 0
    %p81 = por %p79, %p80
    %s83 = sadd.s32 %s82, 1
    %p86 = scmp.eq.s32.totalorder %s13, 1
    %p87 = scmp.ne.s32.totalorder %s82, %s84
    %p88 = scmp.eq.s32.totalorder %s13, 0
    %p89 = por %p87, %p88
    %p90 = scmp.ne.s32.totalorder %s82, %s84
    %p91 = scmp.eq.s32.totalorder %s18, 1
    %p92 = por %p90, %p91
    %p93 = scmp.ne.s32.totalorder %s84, %s85
    %p94 = scmp.eq.s32.totalorder %s18, 0
    %p95 = por %p93, %p94
    %p96 = scmp.ne.s32.totalorder %s84, %s85
    %p97 = scmp.eq.s32.totalorder %s19, 1
    %p98 = por %p96, %p97
    %p100 = scmp.ne.s32.totalorder %s85, %s99
    %p101 = scmp.eq.s32.totalorder %s19, 0
    %p102 = por %p100, %p101
    %s104 = sadd.s32 %s103, 1
    %p107 = scmp.eq.s32.totalorder %s13, 1
    %p108 = scmp.ne.s32.totalorder %s103, %s105
    %p109 = scmp.eq.s32.totalorder %s13, 0
    %p110 = por %p108, %p109
    %p111 = scmp.ne.s32.totalorder %s103, %s105
    %p112 = scmp.eq.s32.totalorder %s18, 1
    %p113 = por %p111, %p112
    %p114 = scmp.ne.s32.totalorder %s105, %s106
    %p115 = scmp.eq.s32.totalorder %s18, 0
    %p116 = por %p114, %p115
    %p117 = scmp.ne.s32.totalorder %s105, %s106
    %p118 = scmp.eq.s32.totalorder %s19, 1
    %p119 = por %p117, %p118
    %p121 = scmp.ne.s32.totalorder %s106, %s120
    %p122 = scmp.eq.s32.totalorder %s19, 0
    %p123 = por %p121, %p122
    %s125 = sadd.s32 %s124, 1
    %p128 = scmp.eq.s32.totalorder %s13, 1
    %p129 = scmp.ne.s32.totalorder %s124, %s126
    %p130 = scmp.eq.s32.totalorder %s13, 0
    %p131 = por %p129, %p130
    %p132 = scmp.ne.s32.totalorder %s124, %s126
    %p133 = scmp.eq.s32.totalorder %s18, 1
    %p134 = por %p132, %p133
    %p135 = scmp.ne.s32.totalorder %s126, %s127
    %p136 = scmp.eq.s32.totalorder %s18, 0
    %p137 = por %p135, %p136
    %p138 = scmp.ne.s32.totalorder %s126, %s127
    %p139 = scmp.eq.s32.totalorder %s19, 1
    %p140 = por %p138, %p139
    %p142 = scmp.ne.s32.totalorder %s127, %s141
    %p143 = scmp.eq.s32.totalorder %s19, 0
    %p144 = por %p142, %p143
    %s146 = sadd.s32 %s145, 1
    %p149 = scmp.eq.s32.totalorder %s13, 1
    %p150 = scmp.ne.s32.totalorder %s145, %s147
    %p151 = scmp.eq.s32.totalorder %s13, 0
    %p152 = por %p150, %p151
    %p153 = scmp.ne.s32.totalorder %s145, %s147
    %p154 = scmp.eq.s32.totalorder %s18, 1
    %p155 = por %p153, %p154
    %p156 = scmp.ne.s32.totalorder %s147, %s148
    %p157 = scmp.eq.s32.totalorder %s18, 0
    %p158 = por %p156, %p157
    %p159 = scmp.ne.s32.totalorder %s147, %s148
    %p160 = scmp.eq.s32.totalorder %s19, 1
    %p161 = por %p159, %p160
    %p163 = scmp.ne.s32.totalorder %s148, %s162
    %p164 = scmp.eq.s32.totalorder %s19, 0
    %p165 = por %p163, %p164
    %s167 = sadd.s32 %s166, 1
    %p170 = scmp.eq.s32.totalorder %s13, 1
    %p171 = scmp.ne.s32.totalorder %s166, %s168
    %p172 = scmp.eq.s32.totalorder %s13, 0
    %p173 = por %p171, %p172
    %p174 = scmp.ne.s32.totalorder %s166, %s168
    %p175 = scmp.eq.s32.totalorder %s18, 1
    %p176 = por %p174, %p175
    %p177 = scmp.ne.s32.totalorder %s168, %s169
    %p178 = scmp.eq.s32.totalorder %s18, 0
    %p179 = por %p177, %p178
    %p180 = scmp.ne.s32.totalorder %s168, %s169
    %p181 = scmp.eq.s32.totalorder %s19, 1
    %p182 = por %p180, %p181
    %p184 = scmp.ne.s32.totalorder %s169, %s183
    %p185 = scmp.eq.s32.totalorder %s19, 0
    %p186 = por %p184, %p185
    %s187 = ssub.s32 %s20, %s32
    %p188 = scmp.eq.s32.totalorder %s187, 0
    %s190 = sadd.s32 %s189, 1
    %s191 = scalar_select %p188, %s189, %s190
    %p194 = pneg %p188
    %p195 = scmp.eq.s32.totalorder %s13, 1
    %p196 = por %p194, %p195
    %p197 = scmp.ne.s32.totalorder %s189, %s192
    %p198 = scmp.eq.s32.totalorder %s13, 0
    %p199 = por %p197, %p198
    %p200 = scmp.ne.s32.totalorder %s189, %s192
    %p201 = scmp.eq.s32.totalorder %s18, 1
    %p202 = por %p200, %p201
    %p203 = scmp.ne.s32.totalorder %s192, %s193
    %p204 = scmp.eq.s32.totalorder %s18, 0
    %p205 = por %p203, %p204
    %p206 = scmp.ne.s32.totalorder %s192, %s193
    %p207 = scmp.eq.s32.totalorder %s19, 1
    %p208 = por %p206, %p207
    %p210 = scmp.ne.s32.totalorder %s193, %s209
    %p211 = scmp.eq.s32.totalorder %s19, 0
    %p212 = por %p210, %p211
    %p213 = scmp.le.s32.totalorder 1, %s13
    %p214 = scmp.lt.s32.totalorder %s13, 3
    %p215 = pnand %p213, %p214
    %p216 = pneg %p215
    // Predicated region
    $region9: #{tpu_custom_call.1} parent=5 // pred_check
      _
    $region10: #{tpu_custom_call.1} parent=5 // pred_check_branch
      %218 = sbr.rel (%p215) target = $region12
    $region11: #{tpu_custom_call.1} parent=5 // pred_region
      %s219 = ssub.s32 %s13, 1
      // Predicated region
      $region13: #{tpu_custom_call.1} parent=11 // pred_check
        %p220 = pneg %p74
      $region14: #{tpu_custom_call.1} parent=11 // pred_check_branch
        %222 = sbr.rel (%p220) target = $region16
      $region15: #{tpu_custom_call.1} parent=11 // pred_region
        _
      $region16: #{tpu_custom_call.1} parent=11 // pred_fallthru
        _
      // Predicated region
      $region17: #{tpu_custom_call.1} parent=11 // pred_check
        %p223 = pneg %p95
      $region18: #{tpu_custom_call.1} parent=11 // pred_check_branch
        %225 = sbr.rel (%p223) target = $region20
      $region19: #{tpu_custom_call.1} parent=11 // pred_region
        _
      $region20: #{tpu_custom_call.1} parent=11 // pred_fallthru
        _
      // Predicated region
      $region21: #{tpu_custom_call.1} parent=11 // pred_check
        %p226 = pneg %p116
      $region22: #{tpu_custom_call.1} parent=11 // pred_check_branch
        %228 = sbr.rel (%p226) target = $region24
      $region23: #{tpu_custom_call.1} parent=11 // pred_region
        _
      $region24: #{tpu_custom_call.1} parent=11 // pred_fallthru
        _
      // Predicated region
      $region25: #{tpu_custom_call.1} parent=11 // pred_check
        %p229 = pneg %p137
      $region26: #{tpu_custom_call.1} parent=11 // pred_check_branch
        %231 = sbr.rel (%p229) target = $region28
      $region27: #{tpu_custom_call.1} parent=11 // pred_region
        _
      $region28: #{tpu_custom_call.1} parent=11 // pred_fallthru
        _
      // Predicated region
      $region29: #{tpu_custom_call.1} parent=11 // pred_check
        %p232 = pneg %p158
      $region30: #{tpu_custom_call.1} parent=11 // pred_check_branch
        %234 = sbr.rel (%p232) target = $region32
      $region31: #{tpu_custom_call.1} parent=11 // pred_region
        _
      $region32: #{tpu_custom_call.1} parent=11 // pred_fallthru
        _
      // Predicated region
      $region33: #{tpu_custom_call.1} parent=11 // pred_check
        %p235 = pneg %p179
      $region34: #{tpu_custom_call.1} parent=11 // pred_check_branch
        %237 = sbr.rel (%p235) target = $region36
      $region35: #{tpu_custom_call.1} parent=11 // pred_region
        _
      $region36: #{tpu_custom_call.1} parent=11 // pred_fallthru
        _
    $region12: #{tpu_custom_call.1} parent=5 // pred_fallthru
      _
    %p238 = scmp.lt.s32.totalorder %s13, 2
    // Predicated region
    $region37: #{tpu_custom_call.1} parent=5 // pred_check
      %p239 = pneg %p238
    $region38: #{tpu_custom_call.1} parent=5 // pred_check_branch
      %241 = sbr.rel (%p239) target = $region40
    $region39: #{tpu_custom_call.1} parent=5 // pred_region
      // Predicated region
      $region41: #{tpu_custom_call.1} parent=39 // pred_check
        %p242 = pneg %p47
      $region42: #{tpu_custom_call.1} parent=39 // pred_check_branch
        %244 = sbr.rel (%p242) target = $region44
      $region43: #{tpu_custom_call.1} parent=39 // pred_region
        %s245 = smul.u32 2, %s21
        %p246 = scmp.lt.s32.totalorder %s20, 1
        %s247 = scalar_select %p246, %s20, 1
        %p248 = scmp.lt.s32.totalorder %s245, 1
        %s249 = scalar_select %p248, %s245, 1
        %s250 = smul.addr %s247, 2
        %s251 = sadd.s32 %s249, %s250
        %s252 = smul.addr %s251, 4
        %s253 = scalar_lea.vmem %s0, %s252
        %s254 = smul.u32 2, %s21
      $region44: #{tpu_custom_call.1} parent=39 // pred_fallthru
        _
    $region40: #{tpu_custom_call.1} parent=5 // pred_fallthru
      _
    %p255 = scmp.le.s32.totalorder 1, %s13
    %p256 = scmp.lt.s32.totalorder %s13, 3
    %p257 = pnand %p255, %p256
    %p258 = pneg %p257
    // Predicated region
    $region45: #{tpu_custom_call.1} parent=5 // pred_check
      _
    $region46: #{tpu_custom_call.1} parent=5 // pred_check_branch
      %260 = sbr.rel (%p257) target = $region48
    $region47: #{tpu_custom_call.1} parent=5 // pred_region
      %s261 = ssub.s32 %s13, 1
      %s262 = smul.u32 2, %s23
      %p263 = scmp.lt.s32.totalorder %s22, 1
      %s264 = scalar_select %p263, %s22, 1
      %p265 = scmp.lt.s32.totalorder %s262, 1
      %s266 = scalar_select %p265, %s262, 1
      %s267 = smul.addr %s264, 2
      %s268 = sadd.s32 %s266, %s267
      %s269 = smul.addr %s268, 4
      %s270 = scalar_lea.vmem %s0, %s269
      %p271 = pneg %p53
      %p272 = pneg %p50
      %p273 = pneg %p74
      %p274 = pneg %p71
      %p275 = pneg %p95
      %p276 = pneg %p92
      %p277 = pneg %p116
      %p278 = pneg %p113
      %p279 = pneg %p137
      %p280 = pneg %p134
      %p281 = pneg %p158
      %p282 = pneg %p155
      %p283 = pneg %p179
      %p284 = pneg %p176
      %p285 = pneg %p205
      %p286 = pneg %p202
      %p287 = scmp.lt.s32.totalorder %s22, 1
      %s288 = scalar_select %p287, %s22, 1
      %s289 = smul.addr %s288, 4
      %s290 = smul.addr %s289, 8
      %s291 = scalar_lea.vmem %s7, %s290
      %s292 = smul.u32 2, %s23
      %p293 = scmp.lt.s32.totalorder %s22, 1
      %s294 = scalar_select %p293, %s22, 1
      %p295 = scmp.lt.s32.totalorder %s292, 1
      %s296 = scalar_select %p295, %s292, 1
      %s297 = smul.addr %s294, 2
      %s298 = sadd.s32 %s296, %s297
      %s299 = smul.addr %s298, 4
      %s300 = scalar_lea.vmem %s0, %s299
      %s301 = smul.u32 2, %s23
      %p302 = scmp.lt.s32.totalorder %s22, 1
      %s303 = scalar_select %p302, %s22, 1
      %s304 = smul.addr %s303, 4
      %s305 = smul.addr %s304, 8
      %s306 = scalar_lea.vmem %s7, %s305
      %p307 = scmp.eq.s32.totalorder %s23, 0
      // Predicated region
      $region49: #{tpu_custom_call.1} parent=47 // pred_check
        %p308 = pneg %p307
      $region50: #{tpu_custom_call.1} parent=47 // pred_check_branch
        %310 = sbr.rel (%p308) target = $region52
      $region51: #{tpu_custom_call.1} parent=47 // pred_region
        %vm311 = vcmask 7168
        %312 = vst.msk [vmem:[#allocation2] sm:$0xff] %vm311, 0.0
        %313 = vst.msk [vmem:[#allocation2 + $0x8] sm:$0xff] %vm311, 0.0
        %314 = vst.msk [vmem:[#allocation2 + $0x10] sm:$0xff] %vm311, 0.0
        %315 = vst.msk [vmem:[#allocation2 + $0x18] sm:$0xff] %vm311, 0.0
      $region52: #{tpu_custom_call.1} parent=47 // pred_fallthru
        _
      %v316 = vld [vmem:[%s300] sm:$0xff]
      %v317 = vld [vmem:[%s1] sm:$0xff]
      %v318 = vld [vmem:[%s1 + $0x8] sm:$0xff]
      %v319 = vld [vmem:[%s1 + $0x10] sm:$0xff]
      %v320 = vld [vmem:[%s1 + $0x18] sm:$0xff]
      %v321 = vld [vmem:[%s2] sm:$0xff]
      %v322 = vld [vmem:[%s2 + $0x8] sm:$0xff]
      %v323 = vld [vmem:[%s2 + $0x10] sm:$0xff]
      %v324 = vld [vmem:[%s2 + $0x18] sm:$0xff]
      %326 = vset.pattern.permute.xlu0 0
      %327 = vperm.xlu0 %326, %v317
      %v328 = vpop.permute.xlu0 %327
      %331 = vset.pattern.permute.xlu0 0
      %332 = vperm.xlu0 %331, %v318
      %v333 = vpop.permute.xlu0 %332
      %336 = vset.pattern.permute.xlu0 0
      %337 = vperm.xlu0 %336, %v319
      %v338 = vpop.permute.xlu0 %337
      %341 = vset.pattern.permute.xlu0 0
      %342 = vperm.xlu0 %341, %v320
      %v343 = vpop.permute.xlu0 %342
      %v346 = vperm.slane %v316, 0
      %v347 = vperm.slane %v316, 4
      %v350 = vperm.slane %v346, 0
      %v351 = vperm.slane %v347, 0
      %v352 = vmul.f32 %v328, %v350
      %v353 = vmul.f32 %v328, %v351
      %v354 = vmul.f32 %v333, %v350
      %v355 = vmul.f32 %v333, %v351
      %v356 = vmul.f32 %v338, %v350
      %v357 = vmul.f32 %v338, %v351
      %v358 = vmul.f32 %v343, %v350
      %v359 = vmul.f32 %v343, %v351
      %361 = vset.pattern.permute.xlu0 0
      %362 = vperm.xlu0 %361, %v321
      %v363 = vpop.permute.xlu0 %362
      %366 = vset.pattern.permute.xlu0 0
      %367 = vperm.xlu0 %366, %v322
      %v368 = vpop.permute.xlu0 %367
      %371 = vset.pattern.permute.xlu0 0
      %372 = vperm.xlu0 %371, %v323
      %v373 = vpop.permute.xlu0 %372
      %376 = vset.pattern.permute.xlu0 0
      %377 = vperm.xlu0 %376, %v324
      %v378 = vpop.permute.xlu0 %377
      %v380 = vadd.f32 %v363, %v352
      %v381 = vadd.f32 %v363, %v353
      %v382 = vadd.f32 %v368, %v354
      %v383 = vadd.f32 %v368, %v355
      %v384 = vadd.f32 %v373, %v356
      %v385 = vadd.f32 %v373, %v357
      %v386 = vadd.f32 %v378, %v358
      %v387 = vadd.f32 %v378, %v359
      %388 = vset.pattern.permute.xlu0 1
      %389 = vperm.xlu0 %388, %v317
      %v390 = vpop.permute.xlu0 %389
      %392 = vset.pattern.permute.xlu0 1
      %393 = vperm.xlu0 %392, %v318
      %v394 = vpop.permute.xlu0 %393
      %396 = vset.pattern.permute.xlu0 1
      %397 = vperm.xlu0 %396, %v319
      %v398 = vpop.permute.xlu0 %397
      %400 = vset.pattern.permute.xlu0 1
      %401 = vperm.xlu0 %400, %v320
      %v402 = vpop.permute.xlu0 %401
      %v404 = vperm.slane %v316, 1
      %v405 = vperm.slane %v316, 5
      %v408 = vperm.slane %v404, 1
      %v409 = vperm.slane %v405, 1
      %v410 = vmul.f32 %v390, %v408
      %v411 = vmul.f32 %v390, %v409
      %v412 = vmul.f32 %v394, %v408
      %v413 = vmul.f32 %v394, %v409
      %v414 = vmul.f32 %v398, %v408
      %v415 = vmul.f32 %v398, %v409
      %v416 = vmul.f32 %v402, %v408
      %v417 = vmul.f32 %v402, %v409
      %v418 = vadd.f32 %v380, %v410
      %v419 = vadd.f32 %v381, %v411
      %v420 = vadd.f32 %v382, %v412
      %v421 = vadd.f32 %v383, %v413
      %v422 = vadd.f32 %v384, %v414
      %v423 = vadd.f32 %v385, %v415
      %v424 = vadd.f32 %v386, %v416
      %v425 = vadd.f32 %v387, %v417
      %426 = vset.pattern.permute.xlu0 2
      %427 = vperm.xlu0 %426, %v317
      %v428 = vpop.permute.xlu0 %427
      %430 = vset.pattern.permute.xlu0 2
      %431 = vperm.xlu0 %430, %v318
      %v432 = vpop.permute.xlu0 %431
      %434 = vset.pattern.permute.xlu0 2
      %435 = vperm.xlu0 %434, %v319
      %v436 = vpop.permute.xlu0 %435
      %438 = vset.pattern.permute.xlu0 2
      %439 = vperm.xlu0 %438, %v320
      %v440 = vpop.permute.xlu0 %439
      %v442 = vperm.slane %v316, 2
      %v443 = vperm.slane %v316, 6
      %v446 = vperm.slane %v442, 2
      %v447 = vperm.slane %v443, 2
      %v448 = vmul.f32 %v428, %v446
      %v449 = vmul.f32 %v428, %v447
      %v450 = vmul.f32 %v432, %v446
      %v451 = vmul.f32 %v432, %v447
      %v452 = vmul.f32 %v436, %v446
      %v453 = vmul.f32 %v436, %v447
      %v454 = vmul.f32 %v440, %v446
      %v455 = vmul.f32 %v440, %v447
      %v456 = vadd.f32 %v418, %v448
      %v457 = vadd.f32 %v419, %v449
      %v458 = vadd.f32 %v420, %v450
      %v459 = vadd.f32 %v421, %v451
      %v460 = vadd.f32 %v422, %v452
      %v461 = vadd.f32 %v423, %v453
      %v462 = vadd.f32 %v424, %v454
      %v463 = vadd.f32 %v425, %v455
      %464 = vset.pattern.permute.xlu0 3
      %465 = vperm.xlu0 %464, %v317
      %v466 = vpop.permute.xlu0 %465
      %468 = vset.pattern.permute.xlu0 3
      %469 = vperm.xlu0 %468, %v318
      %v470 = vpop.permute.xlu0 %469
      %472 = vset.pattern.permute.xlu0 3
      %473 = vperm.xlu0 %472, %v319
      %v474 = vpop.permute.xlu0 %473
      %476 = vset.pattern.permute.xlu0 3
      %477 = vperm.xlu0 %476, %v320
      %v478 = vpop.permute.xlu0 %477
      %v480 = vperm.slane %v316, 3
      %v481 = vperm.slane %v316, 7
      %v484 = vperm.slane %v480, 3
      %v485 = vperm.slane %v481, 3
      %v486 = vmul.f32 %v466, %v484
      %v487 = vmul.f32 %v466, %v485
      %v488 = vmul.f32 %v470, %v484
      %v489 = vmul.f32 %v470, %v485
      %v490 = vmul.f32 %v474, %v484
      %v491 = vmul.f32 %v474, %v485
      %v492 = vmul.f32 %v478, %v484
      %v493 = vmul.f32 %v478, %v485
      %v494 = vadd.f32 %v456, %v486
      %v495 = vadd.f32 %v457, %v487
      %v496 = vadd.f32 %v458, %v488
      %v497 = vadd.f32 %v459, %v489
      %v498 = vadd.f32 %v460, %v490
      %v499 = vadd.f32 %v461, %v491
      %v500 = vadd.f32 %v462, %v492
      %v501 = vadd.f32 %v463, %v493
      %v502 = vmax.f32 %v494, 0.0
      %v503 = vmax.f32 %v495, 0.0
      %v504 = vmax.f32 %v496, 0.0
      %v505 = vmax.f32 %v497, 0.0
      %v506 = vmax.f32 %v498, 0.0
      %v507 = vmax.f32 %v499, 0.0
      %v508 = vmax.f32 %v500, 0.0
      %v509 = vmax.f32 %v501, 0.0
      %v510 = vld [vmem:[#allocation2] sm:$0xff]
      %v511 = vld [vmem:[#allocation2 + $0x8] sm:$0xff]
      %v512 = vld [vmem:[#allocation2 + $0x10] sm:$0xff]
      %v513 = vld [vmem:[#allocation2 + $0x18] sm:$0xff]
      %v514 = vadd.f32 %v502, %v503
      %515 = vadd.xlane.f32.xlu0 %v514
      %v516 = vpop.xlane.xlu0 %515
      %v517 = vadd.f32 %v504, %v505
      %518 = vadd.xlane.f32.xlu0 %v517
      %v519 = vpop.xlane.xlu0 %518
      %v520 = vadd.f32 %v506, %v507
      %521 = vadd.xlane.f32.xlu0 %v520
      %v522 = vpop.xlane.xlu0 %521
      %v523 = vadd.f32 %v508, %v509
      %524 = vadd.xlane.f32.xlu0 %v523
      %v525 = vpop.xlane.xlu0 %524
      %v526 = vadd.f32 %v510, %v516
      %v527 = vadd.f32 %v511, %v519
      %v528 = vadd.f32 %v512, %v522
      %v529 = vadd.f32 %v513, %v525
      %vm530 = vcmask 7168
      %531 = vst.msk [vmem:[#allocation2] sm:$0xff] %vm530, %v526
      %532 = vst.msk [vmem:[#allocation2 + $0x8] sm:$0xff] %vm530, %v527
      %533 = vst.msk [vmem:[#allocation2 + $0x10] sm:$0xff] %vm530, %v528
      %534 = vst.msk [vmem:[#allocation2 + $0x18] sm:$0xff] %vm530, %v529
      // Predicated region
      $region53: #{tpu_custom_call.1} parent=47 // pred_check
        %p535 = pneg %p307
      $region54: #{tpu_custom_call.1} parent=47 // pred_check_branch
        %537 = sbr.rel (%p535) target = $region56
      $region55: #{tpu_custom_call.1} parent=47 // pred_region
        %v538 = vld [vmem:[#allocation2] sm:$0xff]
        %v539 = vld [vmem:[#allocation2 + $0x8] sm:$0xff]
        %v540 = vld [vmem:[#allocation2 + $0x10] sm:$0xff]
        %v541 = vld [vmem:[#allocation2 + $0x18] sm:$0xff]
        %v542 = vmul.f32 %v538, 0.00390625
        %v543 = vmul.f32 %v539, 0.00390625
        %v544 = vmul.f32 %v540, 0.00390625
        %v545 = vmul.f32 %v541, 0.00390625
        %v546 = vld [vmem:[%s6] sm:$0xff]
        %v547 = vld [vmem:[%s6 + $0x8] sm:$0xff]
        %v548 = vld [vmem:[%s6 + $0x10] sm:$0xff]
        %v549 = vld [vmem:[%s6 + $0x18] sm:$0xff]
        %v550 = vadd.f32 %v546, 1e-05
        %v551 = vadd.f32 %v547, 1e-05
        %v552 = vadd.f32 %v548, 1e-05
        %v553 = vadd.f32 %v549, 1e-05
        %v554 = vrsqrt.pop %v550
        %v555 = vmul.f32 %v554, %v550
        %v556 = vmul.f32 %v555, %v554
        %v557 = vmul.f32 0.5, %v556
        %v558 = vsub.f32 1.5, %v557
        %v559 = vmul.f32 %v554, %v558
        %vm560 = vweird.f32 %v550
        %vm561 = vweird.f32 %v554
        %vm562 = vmor %vm560, %vm561
        %v563 = vsel %vm562, %v554, %v559
        %v564 = vrsqrt.pop %v551
        %v565 = vmul.f32 %v564, %v551
        %v566 = vmul.f32 %v565, %v564
        %v567 = vmul.f32 0.5, %v566
        %v568 = vsub.f32 1.5, %v567
        %v569 = vmul.f32 %v564, %v568
        %vm570 = vweird.f32 %v551
        %vm571 = vweird.f32 %v564
        %vm572 = vmor %vm570, %vm571
        %v573 = vsel %vm572, %v564, %v569
        %v574 = vrsqrt.pop %v552
        %v575 = vmul.f32 %v574, %v552
        %v576 = vmul.f32 %v575, %v574
        %v577 = vmul.f32 0.5, %v576
        %v578 = vsub.f32 1.5, %v577
        %v579 = vmul.f32 %v574, %v578
        %vm580 = vweird.f32 %v552
        %vm581 = vweird.f32 %v574
        %vm582 = vmor %vm580, %vm581
        %v583 = vsel %vm582, %v574, %v579
        %v584 = vrsqrt.pop %v553
        %v585 = vmul.f32 %v584, %v553
        %v586 = vmul.f32 %v585, %v584
        %v587 = vmul.f32 0.5, %v586
        %v588 = vsub.f32 1.5, %v587
        %v589 = vmul.f32 %v584, %v588
        %vm590 = vweird.f32 %v553
        %vm591 = vweird.f32 %v584
        %vm592 = vmor %vm590, %vm591
        %v593 = vsel %vm592, %v584, %v589
        %v594 = vld [vmem:[%s5] sm:$0xff]
        %v595 = vld [vmem:[%s5 + $0x8] sm:$0xff]
        %v596 = vld [vmem:[%s5 + $0x10] sm:$0xff]
        %v597 = vld [vmem:[%s5 + $0x18] sm:$0xff]
        %v598 = vsub.f32 %v542, %v594
        %v599 = vsub.f32 %v543, %v595
        %v600 = vsub.f32 %v544, %v596
        %v601 = vsub.f32 %v545, %v597
        %v602 = vmul.f32 %v598, %v563
        %v603 = vmul.f32 %v599, %v573
        %v604 = vmul.f32 %v600, %v583
        %v605 = vmul.f32 %v601, %v593
        %v606 = vld [vmem:[%s3] sm:$0xff]
        %v607 = vld [vmem:[%s3 + $0x8] sm:$0xff]
        %v608 = vld [vmem:[%s3 + $0x10] sm:$0xff]
        %v609 = vld [vmem:[%s3 + $0x18] sm:$0xff]
        %v610 = vmul.f32 %v602, %v606
        %v611 = vmul.f32 %v603, %v607
        %v612 = vmul.f32 %v604, %v608
        %v613 = vmul.f32 %v605, %v609
        %v614 = vld [vmem:[%s4] sm:$0xff]
        %v615 = vld [vmem:[%s4 + $0x8] sm:$0xff]
        %v616 = vld [vmem:[%s4 + $0x10] sm:$0xff]
        %v617 = vld [vmem:[%s4 + $0x18] sm:$0xff]
        %v618 = vadd.f32 %v610, %v614
        %v619 = vadd.f32 %v611, %v615
        %v620 = vadd.f32 %v612, %v616
        %v621 = vadd.f32 %v613, %v617
        %622 = vst.msk [vmem:[%s306] sm:$0xff] %vm530, %v618
        %623 = vst.msk [vmem:[%s306 + $0x8] sm:$0xff] %vm530, %v619
        %624 = vst.msk [vmem:[%s306 + $0x10] sm:$0xff] %vm530, %v620
        %625 = vst.msk [vmem:[%s306 + $0x18] sm:$0xff] %vm530, %v621
      $region56: #{tpu_custom_call.1} parent=47 // pred_fallthru
        _
      %p626 = scmp.lt.s32.totalorder %s22, 1
      %s627 = scalar_select %p626, %s22, 1
      %s628 = smul.addr %s627, 4
      %s629 = smul.addr %s628, 8
      %s630 = scalar_lea.vmem %s7, %s629
      // Predicated region
      $region57: #{tpu_custom_call.1} parent=47 // pred_check
        %p631 = pneg %p202
      $region58: #{tpu_custom_call.1} parent=47 // pred_check_branch
        %633 = sbr.rel (%p631) target = $region60
      $region59: #{tpu_custom_call.1} parent=47 // pred_region
        _
      $region60: #{tpu_custom_call.1} parent=47 // pred_fallthru
        _
    $region48: #{tpu_custom_call.1} parent=5 // pred_fallthru
      _
    %p634 = scmp.le.s32.totalorder 2, %s13
    // Predicated region
    $region61: #{tpu_custom_call.1} parent=5 // pred_check
      %p635 = pneg %p634
    $region62: #{tpu_custom_call.1} parent=5 // pred_check_branch
      %637 = sbr.rel (%p635) target = $region64
    $region63: #{tpu_custom_call.1} parent=5 // pred_region
      %s638 = ssub.s32 %s13, 2
      // Predicated region
      $region65: #{tpu_custom_call.1} parent=63 // pred_check
        %p639 = pneg %p208
      $region66: #{tpu_custom_call.1} parent=63 // pred_check_branch
        %641 = sbr.rel (%p639) target = $region68
      $region67: #{tpu_custom_call.1} parent=63 // pred_region
        %p642 = scmp.lt.s32.totalorder %s24, 1
        %s643 = scalar_select %p642, %s24, 1
        %s644 = smul.addr %s643, 4
        %s645 = smul.addr %s644, 8
        %s646 = scalar_lea.vmem %s7, %s645
      $region68: #{tpu_custom_call.1} parent=63 // pred_fallthru
        _
    $region64: #{tpu_custom_call.1} parent=5 // pred_fallthru
      _
  $region6: #{tpu_custom_call.1} parent=0 // loop_footer
    %s17 = sadd.s32 1, %s13
  $region7: #{tpu_custom_call.1} parent=0 // loop_footer_branch
    %12 = sbr.rel target = $region3
  $region8: #{tpu_custom_call.1} parent=0 // loop_exit
    _

</llo_original>
